<compile_context>
chip_gen: v6e
topology: v6e:2x2x1
jax: 0.10.0
libtpu: 0.0.40
codegen_flags: <defaults>
</compile_context>

<pallas_src>
import functools

import jax
import jax.numpy as jnp
from jax.experimental import pallas as pl
from jax.experimental.pallas import tpu as pltpu


def _round_up(x, m):
    return (x + m - 1) // m * m


@functools.lru_cache(maxsize=1)
def _vmem_capacity_bytes():
    try:
        info = pltpu.get_tpu_info()
        return int(getattr(info, "vmem_capacity_bytes", 64 * 1024 * 1024))
    except Exception:
        return 64 * 1024 * 1024  # conservative (v7x-sized) fallback


def _vmem_limit_bytes(tb, in_dims, hid, ncls, wbytes):
    # Double-buffered activation/output tiles + resident weights/biases + f32 temps.
    act = tb * (in_dims + hid + ncls) * 4
    wts = (in_dims * hid + hid * hid + hid * ncls) * wbytes + (2 * hid + ncls) * 4
    temps = 2 * tb * hid * 4
    need = 2 * (act + wts) + temps
    cap = int(0.75 * _vmem_capacity_bytes())      # ~96 MiB on v5e/v6e, ~48 MiB on v7x
    return int(min(max(4 * need, 32 * 1024 * 1024), cap))


def _choose_batch_tiling(B, tile_b):
    """Minimal batch padding; prefer >=2 tiles so v7x's 2 TCs both get work."""
    sub = 16                                # bf16-friendly sublane multiple (ok for f32)
    n_tiles = pl.cdiv(B, tile_b)
    if B >= 2 * sub:
        n_tiles = max(n_tiles, 2)           # costs one extra grid step on v5e/v6e
    tb = _round_up(pl.cdiv(B, n_tiles), sub)
    n_tiles = pl.cdiv(B, tb)
    return tb, n_tiles * tb


def mlp3_kernel(x_ref, w1_ref, b1_ref, w2_ref, b2_ref, w3_ref, b3_ref,
                before_ref, logits_ref):
    """Full MLP3 forward for one (tile_b, in_dims) batch tile, entirely in VMEM.

    MXU dots run in the weights' dtype (bf16 by default) with f32 accumulation;
    the elementwise epilogue (bias add + ReLU) stays in f32 (v5e-friendly VPU path).
    """
    cdt = w1_ref.dtype                       # MXU compute dtype (bf16 by default)

    # fc1 + ReLU (x is f32 in HBM; cast on the VPU after the DMA)
    h1 = jnp.dot(x_ref[...].astype(cdt), w1_ref[...],
                 preferred_element_type=jnp.float32)
    h1 = jnp.maximum(h1 + b1_ref[...], 0.0)

    # fc2 + ReLU  (this is `before_logits` in the torch module)
    h2 = jnp.dot(h1.astype(cdt), w2_ref[...], preferred_element_type=jnp.float32)
    h2 = jnp.maximum(h2 + b2_ref[...], 0.0)
    before_ref[...] = h2.astype(before_ref.dtype)

    # fc3 (logits)
    logits = jnp.dot(h2.astype(cdt), w3_ref[...], preferred_element_type=jnp.float32)
    logits_ref[...] = (logits + b3_ref[...]).astype(logits_ref.dtype)


@functools.partial(jax.jit, static_argnames=("tile_b",))
def mlp3_forward(x, prepared_params, *, tile_b=512):
    """Pallas wrapper.

    x: (B, in_dims) f32 (or (B,) -> unsqueezed like torch).
    prepared_params: output of `prepare_params` (weights pre-cast, biases (1, out) f32).
    Returns {'before_logits': (B, hid) f32, 'logits': (B, num_classes) f32}.
    """
    w1, b1, w2, b2, w3, b3 = prepared_params
    if x.ndim == 1:                          # mirror torch's `x.unsqueeze(1)`
        x = x[:, None]

    B, in_dims = x.shape
    hid = w1.shape[1]
    num_classes = w3.shape[1]
    wbytes = jnp.dtype(w1.dtype).itemsize

    # Batch tiling with minimal padding (rows only; feature dims stay unpadded).
    tb, B_pad = _choose_batch_tiling(B, tile_b)
    if B_pad != B:
        x = jnp.pad(x, ((0, B_pad - B), (0, 0)))
    grid = (B_pad // tb,)

    # Constant (weight/bias) blocks: same block every grid step -> fetched once.
    const = lambda shape: pl.BlockSpec(shape, lambda i: (0, 0))

    # Cost estimate with TRUE (unpadded) dims.
    flops = 2 * B * (in_dims * hid + hid * hid + hid * num_classes)
    bytes_accessed = (B * in_dims * 4
                      + (in_dims * hid + hid * hid + hid * num_classes) * wbytes
                      + (2 * hid + num_classes) * 4
                      + B * (hid + num_classes) * 4)

    before, logits = pl.pallas_call(
        mlp3_kernel,
        out_shape=(
            jax.ShapeDtypeStruct((B_pad, hid), jnp.float32),
            jax.ShapeDtypeStruct((B_pad, num_classes), jnp.float32),
        ),
        grid_spec=pltpu.PrefetchScalarGridSpec(
            num_scalar_prefetch=0,
            grid=grid,
            in_specs=[
                pl.BlockSpec((tb, in_dims), lambda i: (i, 0)),   # x batch tile (f32)
                const((in_dims, hid)),                           # w1
                const((1, hid)),                                 # b1
                const((hid, hid)),                               # w2
                const((1, hid)),                                 # b2
                const((hid, num_classes)),                       # w3
                const((1, num_classes)),                         # b3
            ],
            out_specs=[
                pl.BlockSpec((tb, hid), lambda i: (i, 0)),           # before_logits
                pl.BlockSpec((tb, num_classes), lambda i: (i, 0)),   # logits
            ],
        ),
        compiler_params=pltpu.CompilerParams(
            dimension_semantics=("parallel",),   # batch tiles shard across v7x's 2 TCs
            vmem_limit_bytes=_vmem_limit_bytes(tb, in_dims, hid, num_classes, wbytes),
        ),
        cost_estimate=pl.CostEstimate(
            flops=flops, transcendentals=0, bytes_accessed=bytes_accessed),
    )(x, w1, b1, w2, b2, w3, b3)

    # Slice away batch padding only (no lane padding to remove anymore).
    return {
        "before_logits": before[:B],
        "logits": logits[:B],
    }


def prepare_params(params, compute_dtype=jnp.bfloat16):
    """One-time parameter prep (outside the per-call path): cast weights to the MXU
    compute dtype and lay biases out as (1, out) f32."""
    w1, b1, w2, b2, w3, b3 = params
    as_bias = lambda b: jnp.asarray(b, jnp.float32).reshape(1, -1)
    return (jnp.asarray(w1, compute_dtype), as_bias(b1),
            jnp.asarray(w2, compute_dtype), as_bias(b2),
            jnp.asarray(w3, compute_dtype), as_bias(b3))


def init_params(key, in_dims, hid_dims, num_classes):
    """Deterministic synthetic init (Kaiming-uniform-ish like torch defaults)."""
    ks = jax.random.split(key, 6)

    def lin(kw, kb, fan_in, fan_out):
        bound = 1.0 / jnp.sqrt(fan_in)
        # stored as (in, out) so the kernel does x @ W
        w = jax.random.uniform(kw, (fan_in, fan_out), jnp.float32, -bound, bound)
        b = jax.random.uniform(kb, (1, fan_out), jnp.float32, -bound, bound)
        return w, b

    w1, b1 = lin(ks[0], ks[1], in_dims, hid_dims)
    w2, b2 = lin(ks[2], ks[3], hid_dims, hid_dims)
    w3, b3 = lin(ks[4], ks[5], hid_dims, num_classes)
    return (w1, b1, w2, b2, w3, b3)


def mlp3_reference(x, params, compute_dtype=jnp.float32):
    """Pure-JAX reference matching the torch forward (optionally emulating bf16 dots)."""
    w1, b1, w2, b2, w3, b3 = params
    if x.ndim == 1:
        x = x[:, None]

    def mm(a, w):
        return jnp.dot(a.astype(compute_dtype), w.astype(compute_dtype),
                       preferred_element_type=jnp.float32)

    h = jnp.maximum(mm(x, w1) + b1, 0.0)
    h = jnp.maximum(mm(h, w2) + b2, 0.0)
    logits = mm(h, w3) + b3
    return {"before_logits": h, "logits": logits}


if __name__ == "__main__":
    in_dims, hid_dims, num_classes = 64, 32, 10

    key = jax.random.PRNGKey(0)
    kx, kp, kx2 = jax.random.split(key, 3)
    params = init_params(kp, in_dims, hid_dims, num_classes)
    pparams = prepare_params(params)                 # cast once, reused every call
    pparams = jax.block_until_ready(pparams)

    # --- Small batch (single tile; exercises unpadded feature dims 64/32/10) ---
    x = jax.random.normal(kx, (8, in_dims), jnp.float32)
    out = mlp3_forward(x, pparams)
    jax.block_until_ready(out)
    assert out["before_logits"].shape == (8, hid_dims)
    assert out["logits"].shape == (8, num_classes)

    # Exact-arithmetic reference (same bf16 MXU path): tight tolerance.
    ref_bf16 = mlp3_reference(x, params, compute_dtype=jnp.bfloat16)
    assert jnp.allclose(out["before_logits"], ref_bf16["before_logits"], atol=1e-3, rtol=1e-3)
    assert jnp.allclose(out["logits"], ref_bf16["logits"], atol=1e-3, rtol=1e-3)

    # Torch-f32 semantics reference: loose tolerance for bf16 dots / f32 accumulation.
    ref_f32 = mlp3_reference(x, params, compute_dtype=jnp.float32)
    assert jnp.allclose(out["logits"], ref_f32["logits"], atol=5e-2, rtol=5e-2)
    assert jnp.allclose(out["before_logits"], ref_f32["before_logits"], atol=5e-2, rtol=5e-2)

    # --- Non-multiple batch (minimal row padding 300->320, 2 parallel tiles) ---
    x2 = jax.random.normal(kx2, (300, in_dims), jnp.float32)
    out2 = mlp3_forward(x2, pparams, tile_b=512)
    jax.block_until_ready(out2)
    ref2 = mlp3_reference(x2, params, compute_dtype=jnp.bfloat16)
    assert out2["logits"].shape == (300, num_classes)
    assert out2["before_logits"].shape == (300, hid_dims)
    assert jnp.allclose(out2["before_logits"], ref2["before_logits"], atol=1e-3, rtol=1e-3)
    assert jnp.allclose(out2["logits"], ref2["logits"], atol=1e-3, rtol=1e-3)

    print("KERNEL_OK")
</pallas_src>

<mosaic_0001>
module attributes {stable_mosaic.version = 11 : i64} {
  func.func @mlp3_kernel(%arg0: i32, %arg1: memref<16x64xf32, #tpu.memory_space<vmem>>, %arg2: memref<64x32xbf16, #tpu.memory_space<vmem>>, %arg3: memref<1x32xf32, #tpu.memory_space<vmem>>, %arg4: memref<32x32xbf16, #tpu.memory_space<vmem>>, %arg5: memref<1x32xf32, #tpu.memory_space<vmem>>, %arg6: memref<32x10xbf16, #tpu.memory_space<vmem>>, %arg7: memref<1x10xf32, #tpu.memory_space<vmem>>, %arg8: memref<16x32xf32, #tpu.memory_space<vmem>>, %arg9: memref<16x10xf32, #tpu.memory_space<vmem>>) attributes {dimension_semantics = [#tpu.dimension_semantics<parallel>], iteration_bounds = array<i64: 1>, scalar_prefetch = 0 : i64, scratch_operands = 0 : i64, tpu.core_type = #tpu.core_type<tc>, window_params = [{transform_indices = @transform_0, window_bounds = array<i64: 16, 64>}, {pipeline_mode = #tpu.pipeline_mode<synchronous>, transform_indices = @transform_1, window_bounds = array<i64: 64, 32>}, {pipeline_mode = #tpu.pipeline_mode<synchronous>, transform_indices = @transform_2, window_bounds = array<i64: 1, 32>}, {pipeline_mode = #tpu.pipeline_mode<synchronous>, transform_indices = @transform_3, window_bounds = array<i64: 32, 32>}, {pipeline_mode = #tpu.pipeline_mode<synchronous>, transform_indices = @transform_4, window_bounds = array<i64: 1, 32>}, {pipeline_mode = #tpu.pipeline_mode<synchronous>, transform_indices = @transform_5, window_bounds = array<i64: 32, 10>}, {pipeline_mode = #tpu.pipeline_mode<synchronous>, transform_indices = @transform_6, window_bounds = array<i64: 1, 10>}, {transform_indices = @transform_7, window_bounds = array<i64: 16, 32>}, {transform_indices = @transform_8, window_bounds = array<i64: 16, 10>}]} {
    %c0 = arith.constant 0 : index
    %c0_0 = arith.constant 0 : index
    %0 = vector.load %arg1[%c0, %c0_0] : memref<16x64xf32, #tpu.memory_space<vmem>>, vector<16x64xf32>
    %1 = arith.truncf %0 : vector<16x64xf32> to vector<16x64xbf16>
    %c0_1 = arith.constant 0 : index
    %c0_2 = arith.constant 0 : index
    %2 = vector.load %arg2[%c0_1, %c0_2] : memref<64x32xbf16, #tpu.memory_space<vmem>>, vector<64x32xbf16>
    %cst = arith.constant dense<0.000000e+00> : vector<16x32xf32>
    %3 = tpu.matmul %1, %2, %cst {dimension_numbers = #tpu.dot_dimension_numbers<[1], [0], [0], [1], [0, 0, 1, 1], [], []>} : vector<16x64xbf16>, vector<64x32xbf16>, vector<16x32xf32> -> vector<16x32xf32>
    %c0_3 = arith.constant 0 : index
    %c0_4 = arith.constant 0 : index
    %4 = vector.load %arg3[%c0_3, %c0_4] : memref<1x32xf32, #tpu.memory_space<vmem>>, vector<1x32xf32>
    %5 = vector.broadcast %4 : vector<1x32xf32> to vector<16x32xf32>
    %6 = arith.addf %3, %5 : vector<16x32xf32>
    %cst_5 = arith.constant 0.000000e+00 : f32
    %7 = vector.broadcast %cst_5 : f32 to vector<16x32xf32>
    %8 = arith.maximumf %6, %7 : vector<16x32xf32>
    %9 = arith.truncf %8 : vector<16x32xf32> to vector<16x32xbf16>
    %c0_6 = arith.constant 0 : index
    %c0_7 = arith.constant 0 : index
    %10 = vector.load %arg4[%c0_6, %c0_7] : memref<32x32xbf16, #tpu.memory_space<vmem>>, vector<32x32xbf16>
    %cst_8 = arith.constant dense<0.000000e+00> : vector<16x32xf32>
    %11 = tpu.matmul %9, %10, %cst_8 {dimension_numbers = #tpu.dot_dimension_numbers<[1], [0], [0], [1], [0, 0, 1, 1], [], []>} : vector<16x32xbf16>, vector<32x32xbf16>, vector<16x32xf32> -> vector<16x32xf32>
    %c0_9 = arith.constant 0 : index
    %c0_10 = arith.constant 0 : index
    %12 = vector.load %arg5[%c0_9, %c0_10] : memref<1x32xf32, #tpu.memory_space<vmem>>, vector<1x32xf32>
    %13 = vector.broadcast %12 : vector<1x32xf32> to vector<16x32xf32>
    %14 = arith.addf %11, %13 : vector<16x32xf32>
    %cst_11 = arith.constant 0.000000e+00 : f32
    %15 = vector.broadcast %cst_11 : f32 to vector<16x32xf32>
    %16 = arith.maximumf %14, %15 : vector<16x32xf32>
    %c0_12 = arith.constant 0 : index
    %c0_13 = arith.constant 0 : index
    %17 = vector.load %arg8[%c0_12, %c0_13] : memref<16x32xf32, #tpu.memory_space<vmem>>, vector<16x32xf32>
    tpu.vector_store %arg8[%c0_12, %c0_13], %16 {strides = array<i32>} : memref<16x32xf32, #tpu.memory_space<vmem>>, vector<16x32xf32>,
    %18 = arith.truncf %16 : vector<16x32xf32> to vector<16x32xbf16>
    %c0_14 = arith.constant 0 : index
    %c0_15 = arith.constant 0 : index
    %19 = vector.load %arg6[%c0_14, %c0_15] : memref<32x10xbf16, #tpu.memory_space<vmem>>, vector<32x10xbf16>
    %cst_16 = arith.constant dense<0.000000e+00> : vector<16x10xf32>
    %20 = tpu.matmul %18, %19, %cst_16 {dimension_numbers = #tpu.dot_dimension_numbers<[1], [0], [0], [1], [0, 0, 1, 1], [], []>} : vector<16x32xbf16>, vector<32x10xbf16>, vector<16x10xf32> -> vector<16x10xf32>
    %c0_17 = arith.constant 0 : index
    %c0_18 = arith.constant 0 : index
    %21 = vector.load %arg7[%c0_17, %c0_18] : memref<1x10xf32, #tpu.memory_space<vmem>>, vector<1x10xf32>
    %22 = vector.broadcast %21 : vector<1x10xf32> to vector<16x10xf32>
    %23 = arith.addf %20, %22 : vector<16x10xf32>
    %c0_19 = arith.constant 0 : index
    %c0_20 = arith.constant 0 : index
    %24 = vector.load %arg9[%c0_19, %c0_20] : memref<16x10xf32, #tpu.memory_space<vmem>>, vector<16x10xf32>
    tpu.vector_store %arg9[%c0_19, %c0_20], %23 {strides = array<i32>} : memref<16x10xf32, #tpu.memory_space<vmem>>, vector<16x10xf32>,
    return
  }
  func.func @transform_0(%arg0: i32) -> (i32, i32) {
    %c0_i32 = arith.constant 0 : i32
    %c0_i32_0 = arith.constant 0 : i32
    return %arg0, %c0_i32 : i32, i32
  }
  func.func @transform_1(%arg0: i32) -> (i32, i32) {
    %c0_i32 = arith.constant 0 : i32
    %c0_i32_0 = arith.constant 0 : i32
    %c0_i32_1 = arith.constant 0 : i32
    return %c0_i32, %c0_i32_0 : i32, i32
  }
  func.func @transform_2(%arg0: i32) -> (i32, i32) {
    %c0_i32 = arith.constant 0 : i32
    %c0_i32_0 = arith.constant 0 : i32
    %c0_i32_1 = arith.constant 0 : i32
    return %c0_i32, %c0_i32_0 : i32, i32
  }
  func.func @transform_3(%arg0: i32) -> (i32, i32) {
    %c0_i32 = arith.constant 0 : i32
    %c0_i32_0 = arith.constant 0 : i32
    %c0_i32_1 = arith.constant 0 : i32
    return %c0_i32, %c0_i32_0 : i32, i32
  }
  func.func @transform_4(%arg0: i32) -> (i32, i32) {
    %c0_i32 = arith.constant 0 : i32
    %c0_i32_0 = arith.constant 0 : i32
    %c0_i32_1 = arith.constant 0 : i32
    return %c0_i32, %c0_i32_0 : i32, i32
  }
  func.func @transform_5(%arg0: i32) -> (i32, i32) {
    %c0_i32 = arith.constant 0 : i32
    %c0_i32_0 = arith.constant 0 : i32
    %c0_i32_1 = arith.constant 0 : i32
    return %c0_i32, %c0_i32_0 : i32, i32
  }
  func.func @transform_6(%arg0: i32) -> (i32, i32) {
    %c0_i32 = arith.constant 0 : i32
    %c0_i32_0 = arith.constant 0 : i32
    %c0_i32_1 = arith.constant 0 : i32
    return %c0_i32, %c0_i32_0 : i32, i32
  }
  func.func @transform_7(%arg0: i32) -> (i32, i32) {
    %c0_i32 = arith.constant 0 : i32
    %c0_i32_0 = arith.constant 0 : i32
    return %arg0, %c0_i32 : i32, i32
  }
  func.func @transform_8(%arg0: i32) -> (i32, i32) {
    %c0_i32 = arith.constant 0 : i32
    %c0_i32_0 = arith.constant 0 : i32
    return %arg0, %c0_i32 : i32, i32
  }
}

</mosaic_0001>

<llo_original>
// kernel: mlp3_forward.1
$region0: #{mlp3_forward.1}
  #allocation0 [shape = 'u32[]', space=smem, size = 0x4, offset = 0x4, fixed_abs, tag = 'smem constant byte address 0x4 - core index']
  #allocation1 [shape = 'u32[144,128]{1,0:T(1,128)}', space=vmem, size = 0x12000, scoped, tag = 'internal scratch']
  %s0 = inlined_call_operand.vmem [shape: f32[16,64], index: 0, kind: input, shape index: {}]
  %s1 = inlined_call_operand.vmem [shape: bf16[64,32], index: 1, kind: input, shape index: {}]
  %s2 = inlined_call_operand.vmem [shape: f32[1,32], index: 2, kind: input, shape index: {}]
  %s3 = inlined_call_operand.vmem [shape: bf16[32,32], index: 3, kind: input, shape index: {}]
  %s4 = inlined_call_operand.vmem [shape: f32[1,32], index: 4, kind: input, shape index: {}]
  %s5 = inlined_call_operand.vmem [shape: bf16[32,10], index: 5, kind: input, shape index: {}]
  %s6 = inlined_call_operand.vmem [shape: f32[1,10], index: 6, kind: input, shape index: {}]
  %s7 = inlined_call_operand.vmem [shape: f32[16,32], index: 7, kind: output, shape index: {0}]
  %s8 = inlined_call_operand.vmem [shape: f32[16,10], index: 8, kind: output, shape index: {1}]
  %9 = xla_tuple %s7, %s8
  %s10 = sld [smem:[#allocation0]]
  $region46: #{mlp3_forward.1} parent=0
    _
  %s12 = ssub.s32 1, %s10
  %s13 = scalar_select 0, %s12, %s10
  // Predicated region
  $region2: #{mlp3_forward.1} parent=0 // pred_check
    _
  $region3: #{mlp3_forward.1} parent=0 // pred_check_branch
    %15 = sbr.rel (0) target = $region5
  $region4: #{mlp3_forward.1} parent=0 // pred_region
    _
  $region5: #{mlp3_forward.1} parent=0 // pred_fallthru
    _
  // Predicated region
  $region6: #{mlp3_forward.1} parent=0 // pred_check
    _
  $region7: #{mlp3_forward.1} parent=0 // pred_check_branch
    %17 = sbr.rel (0) target = $region9
  $region8: #{mlp3_forward.1} parent=0 // pred_region
    _
  $region9: #{mlp3_forward.1} parent=0 // pred_fallthru
    _
  // Predicated region
  $region10: #{mlp3_forward.1} parent=0 // pred_check
    _
  $region11: #{mlp3_forward.1} parent=0 // pred_check_branch
    %19 = sbr.rel (0) target = $region13
  $region12: #{mlp3_forward.1} parent=0 // pred_region
    _
  $region13: #{mlp3_forward.1} parent=0 // pred_fallthru
    _
  // Predicated region
  $region14: #{mlp3_forward.1} parent=0 // pred_check
    _
  $region15: #{mlp3_forward.1} parent=0 // pred_check_branch
    %21 = sbr.rel (0) target = $region17
  $region16: #{mlp3_forward.1} parent=0 // pred_region
    _
  $region17: #{mlp3_forward.1} parent=0 // pred_fallthru
    _
  // Predicated region
  $region18: #{mlp3_forward.1} parent=0 // pred_check
    _
  $region19: #{mlp3_forward.1} parent=0 // pred_check_branch
    %23 = sbr.rel (0) target = $region21
  $region20: #{mlp3_forward.1} parent=0 // pred_region
    _
  $region21: #{mlp3_forward.1} parent=0 // pred_fallthru
    _
  // Predicated region
  $region22: #{mlp3_forward.1} parent=0 // pred_check
    _
  $region23: #{mlp3_forward.1} parent=0 // pred_check_branch
    %25 = sbr.rel (0) target = $region25
  $region24: #{mlp3_forward.1} parent=0 // pred_region
    _
  $region25: #{mlp3_forward.1} parent=0 // pred_fallthru
    _
  // Predicated region
  $region26: #{mlp3_forward.1} parent=0 // pred_check
    _
  $region27: #{mlp3_forward.1} parent=0 // pred_check_branch
    %27 = sbr.rel (0) target = $region29
  $region28: #{mlp3_forward.1} parent=0 // pred_region
    _
  $region29: #{mlp3_forward.1} parent=0 // pred_fallthru
    _
  %v29 = vld [vmem:[%s0] sm:$0xff]
  %v30 = vld [vmem:[%s0 + $0x8] sm:$0xff]
  %v31 = vpack.c.bf16 %v30, %v29
  %v32 = vld [vmem:[%s1] sm:$0xf]
  %v33 = vld [vmem:[%s1 + $0x4] sm:$0xf]
  %v34 = vld [vmem:[%s1 + $0x8] sm:$0xf]
  %v35 = vld [vmem:[%s1 + $0xc] sm:$0xf]
  %v36 = vld [vmem:[%s1 + $0x10] sm:$0xf]
  %v37 = vld [vmem:[%s1 + $0x14] sm:$0xf]
  %v38 = vld [vmem:[%s1 + $0x18] sm:$0xf]
  %v39 = vld [vmem:[%s1 + $0x1c] sm:$0xf]
  %v40 = vld [vmem:[%s2] sm:$0x1]
  %v42 = vlaneseq
  %v43 = vshrl.u32 %v42, 7
  %v44 = vsub.s32 0, %v43
  %v45 = vrot.slane %v40, %v44
  %v55 = vunpack.c.l.b16 %v32
  %v56 = vunpack.c.l.b16 %v33
  %v57 = vunpack.c.l.b16 %v34
  %v58 = vunpack.c.l.b16 %v35
  %v59 = vunpack.c.l.b16 %v36
  %v60 = vunpack.c.l.b16 %v37
  %v61 = vunpack.c.l.b16 %v38
  %v62 = vunpack.c.l.b16 %v39
  %v63 = vpack.c.b16 %v56, %v55
  %v64 = vpack.c.b16 %v58, %v57
  %v65 = vpack.c.b16 %v60, %v59
  %v66 = vpack.c.b16 %v62, %v61
  %vm71 = vcmask 523264
  %v73 = vsel %vm71, %v31, 0
  %75 = vmatprep.subr.bf16.mxu0 0
  %76 = vmatpush1.bf16.msra.mxu0 0
  %77 = vmatprep.subr.bf16.mxu0 0
  %78 = vmatpush1.bf16.msra.mxu0 0
  %79 = vmatprep.subr.bf16.mxu0 0
  %80 = vmatpush1.bf16.msra.mxu0 0
  %81 = vmatprep.subr.bf16.mxu0 0
  %82 = vmatpush1.bf16.msra.mxu0 0
  %83 = vmatprep.subr.bf16.mxu0 0
  %84 = vmatpush1.bf16.msra.mxu0 %v66
  %85 = vmatprep.subr.bf16.mxu0 0
  %86 = vmatpush1.bf16.msra.mxu0 %v65
  %87 = vmatprep.subr.bf16.mxu0 0
  %88 = vmatpush1.bf16.msra.mxu0 %v64
  %89 = vmatprep.subr.bf16.mxu0 0
  %90 = vmatpush1.bf16.msra.mxu0 %v63
  %91 = vmatprep.subr.bf16.mxu0 0
  %92 = vmatpush2.bf16.msra.mxu0 0
  %93 = vmatprep.subr.bf16.mxu0 0
  %94 = vmatpush2.bf16.msra.mxu0 0
  %95 = vmatprep.subr.bf16.mxu0 0
  %96 = vmatpush2.bf16.msra.mxu0 0
  %97 = vmatprep.subr.bf16.mxu0 0
  %98 = vmatpush2.bf16.msra.mxu0 0
  %99 = vmatprep.subr.bf16.mxu0 0
  %100 = vmatpush2.bf16.msra.mxu0 0
  %101 = vmatprep.subr.bf16.mxu0 0
  %102 = vmatpush2.bf16.msra.mxu0 0
  %103 = vmatprep.subr.bf16.mxu0 0
  %104 = vmatpush2.bf16.msra.mxu0 0
  %105 = vmatprep.subr.bf16.mxu0 0
  %106 = vmatpush2.bf16.msra.mxu0 0
  %107 = vmatprep.mubr.bf16.mxu0 0
  %108 = vmatmul.mubr.bf16.gmra.mxu0 %v73
  %v109 = vpop.f32.mrf.mxu0
  %v110 = vadd.f32 %v45, %v109
  %v111 = vpop.f32.mrf.mxu0
  %v112 = vpop.f32.mrf.mxu0
  %v113 = vadd.f32 %v45, %v112
  %v114 = vpop.f32.mrf.mxu0
  %115 = vdwg.mxu0
  %v116 = vmax.f32 %v110, 0.0
  %v117 = vmax.f32 %v113, 0.0
  %v118 = vpack.c.bf16 %v117, %v116
  %v119 = vld [vmem:[%s3] sm:$0xf]
  %v120 = vld [vmem:[%s3 + $0x4] sm:$0xf]
  %v121 = vld [vmem:[%s3 + $0x8] sm:$0xf]
  %v122 = vld [vmem:[%s3 + $0xc] sm:$0xf]
  %v123 = vld [vmem:[%s4] sm:$0x1]
  %v125 = vlaneseq
  %v126 = vshrl.u32 %v125, 7
  %v127 = vsub.s32 0, %v126
  %v128 = vrot.slane %v123, %v127
  %v134 = vunpack.c.l.b16 %v119
  %v135 = vunpack.c.l.b16 %v120
  %v136 = vunpack.c.l.b16 %v121
  %v137 = vunpack.c.l.b16 %v122
  %v138 = vpack.c.b16 %v135, %v134
  %v139 = vpack.c.b16 %v137, %v136
  %vm142 = vcmask 261120
  %v144 = vsel %vm142, %v118, 0
  %146 = vmatprep.subr.bf16.mxu0 0
  %147 = vmatpush1.bf16.msra.mxu0 0
  %148 = vmatprep.subr.bf16.mxu0 0
  %149 = vmatpush1.bf16.msra.mxu0 0
  %150 = vmatprep.subr.bf16.mxu0 0
  %151 = vmatpush1.bf16.msra.mxu0 0
  %152 = vmatprep.subr.bf16.mxu0 0
  %153 = vmatpush1.bf16.msra.mxu0 0
  %154 = vmatprep.subr.bf16.mxu0 0
  %155 = vmatpush1.bf16.msra.mxu0 0
  %156 = vmatprep.subr.bf16.mxu0 0
  %157 = vmatpush1.bf16.msra.mxu0 0
  %158 = vmatprep.subr.bf16.mxu0 0
  %159 = vmatpush1.bf16.msra.mxu0 %v139
  %160 = vmatprep.subr.bf16.mxu0 0
  %161 = vmatpush1.bf16.msra.mxu0 %v138
  %162 = vmatprep.subr.bf16.mxu0 0
  %163 = vmatpush2.bf16.msra.mxu0 0
  %164 = vmatprep.subr.bf16.mxu0 0
  %165 = vmatpush2.bf16.msra.mxu0 0
  %166 = vmatprep.subr.bf16.mxu0 0
  %167 = vmatpush2.bf16.msra.mxu0 0
  %168 = vmatprep.subr.bf16.mxu0 0
  %169 = vmatpush2.bf16.msra.mxu0 0
  %170 = vmatprep.subr.bf16.mxu0 0
  %171 = vmatpush2.bf16.msra.mxu0 0
  %172 = vmatprep.subr.bf16.mxu0 0
  %173 = vmatpush2.bf16.msra.mxu0 0
  %174 = vmatprep.subr.bf16.mxu0 0
  %175 = vmatpush2.bf16.msra.mxu0 0
  %176 = vmatprep.subr.bf16.mxu0 0
  %177 = vmatpush2.bf16.msra.mxu0 0
  %178 = vmatprep.mubr.bf16.mxu0 0
  %179 = vmatmul.mubr.bf16.gmra.mxu0 %v144
  %v180 = vpop.f32.mrf.mxu0
  %v181 = vadd.f32 %v128, %v180
  %v182 = vpop.f32.mrf.mxu0
  %v183 = vpop.f32.mrf.mxu0
  %v184 = vadd.f32 %v128, %v183
  %v185 = vpop.f32.mrf.mxu0
  %186 = vdwg.mxu0
  %v187 = vmax.f32 %v181, 0.0
  %v188 = vmax.f32 %v184, 0.0
  %189 = vst.msk [vmem:[%s7] sm:$0xff] %vm142, %v187
  %190 = vst.msk [vmem:[%s7 + $0x8] sm:$0xff] %vm142, %v188
  %v191 = vpack.c.bf16 %v188, %v187
  %v192 = vld [vmem:[%s5] sm:$0xf]
  %v193 = vld [vmem:[%s5 + $0x4] sm:$0xf]
  %v194 = vld [vmem:[%s5 + $0x8] sm:$0xf]
  %v195 = vld [vmem:[%s5 + $0xc] sm:$0xf]
  %v196 = vld [vmem:[%s6] sm:$0x1]
  %v198 = vlaneseq
  %v199 = vshrl.u32 %v198, 7
  %v200 = vsub.s32 0, %v199
  %v201 = vrot.slane %v196, %v200
  %v207 = vunpack.c.l.b16 %v192
  %v208 = vunpack.c.l.b16 %v193
  %v209 = vunpack.c.l.b16 %v194
  %v210 = vunpack.c.l.b16 %v195
  %v211 = vpack.c.b16 %v208, %v207
  %v212 = vpack.c.b16 %v210, %v209
  %v216 = vsel %vm142, %v191, 0
  %218 = vmatprep.subr.bf16.mxu0 0
  %219 = vmatpush1.bf16.msra.mxu0 0
  %220 = vmatprep.subr.bf16.mxu0 0
  %221 = vmatpush1.bf16.msra.mxu0 0
  %222 = vmatprep.subr.bf16.mxu0 0
  %223 = vmatpush1.bf16.msra.mxu0 0
  %224 = vmatprep.subr.bf16.mxu0 0
  %225 = vmatpush1.bf16.msra.mxu0 0
  %226 = vmatprep.subr.bf16.mxu0 0
  %227 = vmatpush1.bf16.msra.mxu0 0
  %228 = vmatprep.subr.bf16.mxu0 0
  %229 = vmatpush1.bf16.msra.mxu0 0
  %230 = vmatprep.subr.bf16.mxu0 0
  %231 = vmatpush1.bf16.msra.mxu0 %v212
  %232 = vmatprep.subr.bf16.mxu0 0
  %233 = vmatpush1.bf16.msra.mxu0 %v211
  %234 = vmatprep.subr.bf16.mxu0 0
  %235 = vmatpush2.bf16.msra.mxu0 0
  %236 = vmatprep.subr.bf16.mxu0 0
  %237 = vmatpush2.bf16.msra.mxu0 0
  %238 = vmatprep.subr.bf16.mxu0 0
  %239 = vmatpush2.bf16.msra.mxu0 0
  %240 = vmatprep.subr.bf16.mxu0 0
  %241 = vmatpush2.bf16.msra.mxu0 0
  %242 = vmatprep.subr.bf16.mxu0 0
  %243 = vmatpush2.bf16.msra.mxu0 0
  %244 = vmatprep.subr.bf16.mxu0 0
  %245 = vmatpush2.bf16.msra.mxu0 0
  %246 = vmatprep.subr.bf16.mxu0 0
  %247 = vmatpush2.bf16.msra.mxu0 0
  %248 = vmatprep.subr.bf16.mxu0 0
  %249 = vmatpush2.bf16.msra.mxu0 0
  %250 = vmatprep.mubr.bf16.mxu0 0
  %251 = vmatmul.mubr.bf16.gmra.mxu0 %v216
  %v252 = vpop.f32.mrf.mxu0
  %v253 = vadd.f32 %v201, %v252
  %v254 = vpop.f32.mrf.mxu0
  %v255 = vpop.f32.mrf.mxu0
  %v256 = vadd.f32 %v201, %v255
  %v257 = vpop.f32.mrf.mxu0
  %258 = vdwg.mxu0
  %vm259 = vcmask 80896
  %260 = vst.msk [vmem:[%s8] sm:$0xff] %vm259, %v253
  %261 = vst.msk [vmem:[%s8 + $0x8] sm:$0xff] %vm259, %v256
  // Predicated region
  $region30: #{mlp3_forward.1} parent=0 // pred_check
    _
  $region31: #{mlp3_forward.1} parent=0 // pred_check_branch
    %263 = sbr.rel (0) target = $region33
  $region32: #{mlp3_forward.1} parent=0 // pred_region
    _
  $region33: #{mlp3_forward.1} parent=0 // pred_fallthru
    _
  // Predicated region
  $region34: #{mlp3_forward.1} parent=0 // pred_check
    _
  $region35: #{mlp3_forward.1} parent=0 // pred_check_branch
    %265 = sbr.rel (0) target = $region37
  $region36: #{mlp3_forward.1} parent=0 // pred_region
    _
  $region37: #{mlp3_forward.1} parent=0 // pred_fallthru
    _
  // Predicated region
  $region38: #{mlp3_forward.1} parent=0 // pred_check
    _
  $region39: #{mlp3_forward.1} parent=0 // pred_check_branch
    %267 = sbr.rel (0) target = $region41
  $region40: #{mlp3_forward.1} parent=0 // pred_region
    _
  $region41: #{mlp3_forward.1} parent=0 // pred_fallthru
    _
  // Predicated region
  $region42: #{mlp3_forward.1} parent=0 // pred_check
    _
  $region43: #{mlp3_forward.1} parent=0 // pred_check_branch
    %269 = sbr.rel (0) target = $region45
  $region44: #{mlp3_forward.1} parent=0 // pred_region
    _
  $region45: #{mlp3_forward.1} parent=0 // pred_fallthru
    _

</llo_original>
